<compile_context>
chip_gen: v7x
topology: tpu7x:2x2x1
jax: 0.10.0
libtpu: 0.0.40
codegen_flags: <defaults>
</compile_context>

<pallas_src>
from functools import partial

import jax
import jax.numpy as jnp
from jax.experimental import pallas as pl
from jax.experimental.pallas import tpu as pltpu


def _round_up(x, m):
    return (x + m - 1) // m * m


# ----------------------------------------------------------------------------
# Fused encoder kernel
#   refs = (x, [c], w0_x, [w0_lbl], b0, [w_i, b_i]*, w_head, b_head,
#           means_out, logvar_out)
# ----------------------------------------------------------------------------
def _encoder_fused_kernel(*refs, conditional, num_extra, latent, latent_pad,
                          compute_dtype):
    i = 0
    x_ref = refs[i]; i += 1
    if conditional:
        c_ref = refs[i]; i += 1
    w0x_ref = refs[i]; i += 1
    if conditional:
        w0l_ref = refs[i]; i += 1
    b0_ref = refs[i]; i += 1
    extra = refs[i:i + 2 * num_extra]; i += 2 * num_extra
    wh_ref = refs[i]
    bh_ref = refs[i + 1]
    means_ref, logvar_ref = refs[-2], refs[-1]

    # Layer 0: x @ W0_x (+ one_hot(c) @ W0_lbl) + b0, ReLU.
    x = x_ref[...].astype(compute_dtype)                       # (tm, d0)
    acc = jnp.dot(x, w0x_ref[...], preferred_element_type=jnp.float32)
    if conditional:
        c = c_ref[...]                                          # (tm, 1) int32
        labels_pad = w0l_ref.shape[0]
        onehot = (jax.lax.broadcasted_iota(jnp.int32,
                                           (x.shape[0], labels_pad), 1)
                  == c).astype(compute_dtype)                   # (tm, L_pad)
        acc = acc + jnp.dot(onehot, w0l_ref[...],
                            preferred_element_type=jnp.float32)
    h = jnp.maximum(acc + b0_ref[...], 0.0).astype(compute_dtype)

    # Remaining hidden layers (unrolled at trace time).
    for l in range(num_extra):
        w = extra[2 * l][...]
        b = extra[2 * l + 1][...]
        acc = jnp.dot(h, w, preferred_element_type=jnp.float32) + b
        h = jnp.maximum(acc, 0.0).astype(compute_dtype)

    # Fused (means | log_var) head; slices are lane-group aligned
    # (means at col 0, log_var at col latent_pad).
    head = jnp.dot(h, wh_ref[...], preferred_element_type=jnp.float32)
    head = head + bh_ref[...]
    means_ref[...] = head[:, :latent].astype(means_ref.dtype)
    logvar_ref[...] = head[:, latent_pad:latent_pad + latent].astype(
        logvar_ref.dtype)


# ----------------------------------------------------------------------------
# Parameter init (mirrors nn.Linear's U(-1/sqrt(in), 1/sqrt(in)))
# ----------------------------------------------------------------------------
def init_encoder_params(key, layer_sizes, latent_size, conditional, num_labels):
    layer_sizes = list(layer_sizes)
    if conditional:
        layer_sizes[0] += num_labels

    params = {"mlp": [], "means": None, "log_var": None}

    def make_linear(k, in_size, out_size):
        kw, kb = jax.random.split(k)
        bound = 1.0 / jnp.sqrt(in_size)
        w = jax.random.uniform(kw, (in_size, out_size), jnp.float32, -bound, bound)
        b = jax.random.uniform(kb, (1, out_size), jnp.float32, -bound, bound)
        return w, b

    keys = jax.random.split(key, len(layer_sizes) + 1)
    for i, (in_size, out_size) in enumerate(zip(layer_sizes[:-1], layer_sizes[1:])):
        params["mlp"].append(make_linear(keys[i], in_size, out_size))
    params["means"] = make_linear(keys[-2], layer_sizes[-1], latent_size)
    params["log_var"] = make_linear(keys[-1], layer_sizes[-1], latent_size)
    return params


# ----------------------------------------------------------------------------
# One-time parameter preparation (hoisted out of the per-call path)
# ----------------------------------------------------------------------------
def prepare_encoder_params(params, *, conditional, num_labels,
                           compute_dtype=jnp.bfloat16):
    """Cast to compute dtype, zero-pad feature dims to 128 lanes, split the
    first layer into (x-part, label-part) when conditional, and fuse the two
    heads into one lane-group-aligned weight slab. Call once; reuse."""
    sub = 8 if jnp.dtype(compute_dtype).itemsize >= 4 else 16

    def pad_w(w, rows_pad, cols_pad):
        out = jnp.zeros((rows_pad, cols_pad), compute_dtype)
        return out.at[:w.shape[0], :w.shape[1]].set(w.astype(compute_dtype))

    def pad_b(b, cols_pad):
        out = jnp.zeros((1, cols_pad), jnp.float32)
        return out.at[:, :b.shape[1]].set(b.astype(jnp.float32))

    mlp = list(params["mlp"])
    w0, b0 = mlp[0]
    in0, n0 = w0.shape
    n0_pad = _round_up(n0, 128)

    prepped = {"conditional": conditional, "compute_dtype": compute_dtype,
               "num_labels": num_labels}
    if conditional:
        d0 = in0 - num_labels
        lbl_pad = _round_up(num_labels, sub)
        prepped["w0_x"] = pad_w(w0[:d0], d0, n0_pad)        # true x width, no K pad
        prepped["w0_lbl"] = pad_w(w0[d0:], lbl_pad, n0_pad)
        prepped["d0"] = d0
    else:
        prepped["w0_x"] = pad_w(w0, in0, n0_pad)
        prepped["w0_lbl"] = None
        prepped["d0"] = in0
    prepped["b0"] = pad_b(b0, n0_pad)

    hidden = []
    k_prev, kp_prev = n0, n0_pad
    for (w, b) in mlp[1:]:
        n = w.shape[1]
        n_pad = _round_up(n, 128)
        hidden.append((pad_w(w, kp_prev, n_pad), pad_b(b, n_pad)))
        k_prev, kp_prev = n, n_pad
    prepped["hidden"] = hidden

    w_m, b_m = params["means"]
    w_v, b_v = params["log_var"]
    latent = w_m.shape[1]
    latent_pad = _round_up(latent, 128)
    w_head = jnp.zeros((kp_prev, 2 * latent_pad), compute_dtype)
    w_head = w_head.at[:k_prev, :latent].set(w_m.astype(compute_dtype))
    w_head = w_head.at[:k_prev, latent_pad:latent_pad + latent].set(
        w_v.astype(compute_dtype))
    b_head = jnp.zeros((1, 2 * latent_pad), jnp.float32)
    b_head = b_head.at[:, :latent].set(b_m.astype(jnp.float32))
    b_head = b_head.at[:, latent_pad:latent_pad + latent].set(
        b_v.astype(jnp.float32))
    prepped["w_head"] = w_head
    prepped["b_head"] = b_head
    prepped["latent"] = latent
    prepped["latent_pad"] = latent_pad
    return prepped


# ----------------------------------------------------------------------------
# Fused forward (single pallas_call)
# ----------------------------------------------------------------------------
def encoder_forward(prepped, x, c=None, *, max_tm=512):
    """Returns (means, log_vars), both float32 of shape (batch, latent)."""
    conditional = prepped["conditional"]
    compute_dtype = prepped["compute_dtype"]
    latent = prepped["latent"]
    latent_pad = prepped["latent_pad"]

    M, d0 = x.shape
    if d0 != prepped["d0"]:
        raise ValueError(f"x feature dim {d0} != expected {prepped['d0']}")

    # Row tiling: one grid step whenever the batch fits a tile (no forced
    # split — pure per-step overhead on single-TC v5e/v6e). Large batches
    # split into >=512-row "parallel" steps -> both v7x TensorCores.
    tm = M if M <= max_tm else max_tm
    grid = (pl.cdiv(M, tm),)

    operands = [x]
    in_specs = [pl.BlockSpec((tm, d0), lambda i: (i, 0))]
    if conditional:
        if c is None:
            raise ValueError("conditional encoder requires labels c")
        operands.append(jnp.asarray(c, jnp.int32).reshape(M, 1))
        in_specs.append(pl.BlockSpec((tm, 1), lambda i: (i, 0)))

    def add_param(arr):
        operands.append(arr)
        # Grid-invariant parameter: whole (tiny) array resident in VMEM.
        in_specs.append(pl.BlockSpec(arr.shape, lambda i: (0, 0)))

    add_param(prepped["w0_x"])
    if conditional:
        add_param(prepped["w0_lbl"])
    add_param(prepped["b0"])
    for (w, b) in prepped["hidden"]:
        add_param(w)
        add_param(b)
    add_param(prepped["w_head"])
    add_param(prepped["b_head"])

    kernel = partial(_encoder_fused_kernel,
                     conditional=conditional,
                     num_extra=len(prepped["hidden"]),
                     latent=latent, latent_pad=latent_pad,
                     compute_dtype=compute_dtype)

    out_shape = (jax.ShapeDtypeStruct((M, latent), jnp.float32),
                 jax.ShapeDtypeStruct((M, latent), jnp.float32))
    out_specs = (pl.BlockSpec((tm, latent), lambda i: (i, 0)),
                 pl.BlockSpec((tm, latent), lambda i: (i, 0)))

    means, log_vars = pl.pallas_call(
        kernel,
        out_shape=out_shape,
        grid=grid,
        in_specs=in_specs,
        out_specs=out_specs,
        compiler_params=pltpu.CompilerParams(
            dimension_semantics=("parallel",),
            # Generous but explicit scoped-VMEM cap: fine on v5e/v6e (128 MiB
            # physical) and within v7x's 64 MiB physical; plenty even if this
            # encoder is reused with MNIST-scale layers (784x512+).
            vmem_limit_bytes=32 * 1024 * 1024),
    )(*operands)
    return means, log_vars


# ----------------------------------------------------------------------------
# Reference (plain JAX, f32) for correctness checks
# ----------------------------------------------------------------------------
def encoder_forward_ref(params, x, c=None, *, conditional=False, num_labels=10):
    if conditional:
        x = jnp.concatenate(
            [x, jax.nn.one_hot(c, num_labels, dtype=x.dtype)], axis=-1)
    for w, b in params["mlp"]:
        x = jnp.maximum(x @ w + b, 0.0)
    return (x @ params["means"][0] + params["means"][1],
            x @ params["log_var"][0] + params["log_var"][1])


if __name__ == "__main__":
    key = jax.random.PRNGKey(0)

    def run_check(layer_sizes, latent_size, conditional, num_labels, batch,
                  compute_dtype, tol, seed_salt):
        k_param, k_data = jax.random.split(jax.random.fold_in(key, seed_salt))
        raw = init_encoder_params(k_param, list(layer_sizes), latent_size,
                                  conditional, num_labels)
        prepped = prepare_encoder_params(raw, conditional=conditional,
                                         num_labels=num_labels,
                                         compute_dtype=compute_dtype)
        kx, kc = jax.random.split(k_data)
        x = jax.random.normal(kx, (batch, layer_sizes[0]), jnp.float32)
        c = (jax.random.randint(kc, (batch,), 0, num_labels)
             if conditional else None)

        means, log_vars = encoder_forward(prepped, x, c)
        means, log_vars = jax.block_until_ready((means, log_vars))

        m_ref, lv_ref = encoder_forward_ref(raw, x, c, conditional=conditional,
                                            num_labels=num_labels)
        assert means.shape == (batch, latent_size)
        assert log_vars.shape == (batch, latent_size)
        assert jnp.allclose(means, m_ref, atol=tol, rtol=tol), \
            float(jnp.max(jnp.abs(means - m_ref)))
        assert jnp.allclose(log_vars, lv_ref, atol=tol, rtol=tol), \
            float(jnp.max(jnp.abs(log_vars - lv_ref)))

    # 1) conditional, f32 compute path (tight numerics), single grid step.
    run_check([32, 64], 16, True, 10, batch=8,
              compute_dtype=jnp.float32, tol=1e-4, seed_salt=1)
    # 2) conditional, bf16 MXU path, odd small batch (block == full dims).
    run_check([32, 64], 16, True, 10, batch=5,
              compute_dtype=jnp.bfloat16, tol=3e-2, seed_salt=2)
    # 3) conditional, bf16, batch=300 -> still a single 300-row tile.
    run_check([32, 64], 16, True, 10, batch=300,
              compute_dtype=jnp.bfloat16, tol=3e-2, seed_salt=3)
    # 4) conditional, bf16, batch=1100 -> 3 parallel 512-row steps with a
    #    ragged (masked) final block.
    run_check([32, 64], 16, True, 10, batch=1100,
              compute_dtype=jnp.bfloat16, tol=3e-2, seed_salt=4)
    # 5) unconditional, two hidden layers, f32 compute path.
    run_check([32, 64, 48], 16, False, 10, batch=17,
              compute_dtype=jnp.float32, tol=1e-4, seed_salt=5)

    print("KERNEL_OK")
</pallas_src>

<mosaic_0001>
module attributes {stable_mosaic.version = 11 : i64} {
  func.func @_encoder_fused_kernel(%arg0: i32, %arg1: memref<8x32xf32, #tpu.memory_space<vmem>>, %arg2: memref<8x1xi32, #tpu.memory_space<vmem>>, %arg3: memref<32x128xf32, #tpu.memory_space<vmem>>, %arg4: memref<16x128xf32, #tpu.memory_space<vmem>>, %arg5: memref<1x128xf32, #tpu.memory_space<vmem>>, %arg6: memref<128x256xf32, #tpu.memory_space<vmem>>, %arg7: memref<1x256xf32, #tpu.memory_space<vmem>>, %arg8: memref<8x16xf32, #tpu.memory_space<vmem>>, %arg9: memref<8x16xf32, #tpu.memory_space<vmem>>) attributes {dimension_semantics = [#tpu.dimension_semantics<parallel>], iteration_bounds = array<i64: 1>, scalar_prefetch = 0 : i64, scratch_operands = 0 : i64, tpu.core_type = #tpu.core_type<tc>, window_params = [{transform_indices = @transform_0, window_bounds = array<i64: 8, 32>}, {transform_indices = @transform_1, window_bounds = array<i64: 8, 1>}, {pipeline_mode = #tpu.pipeline_mode<synchronous>, transform_indices = @transform_2, window_bounds = array<i64: 32, 128>}, {pipeline_mode = #tpu.pipeline_mode<synchronous>, transform_indices = @transform_3, window_bounds = array<i64: 16, 128>}, {pipeline_mode = #tpu.pipeline_mode<synchronous>, transform_indices = @transform_4, window_bounds = array<i64: 1, 128>}, {pipeline_mode = #tpu.pipeline_mode<synchronous>, transform_indices = @transform_5, window_bounds = array<i64: 128, 256>}, {pipeline_mode = #tpu.pipeline_mode<synchronous>, transform_indices = @transform_6, window_bounds = array<i64: 1, 256>}, {transform_indices = @transform_7, window_bounds = array<i64: 8, 16>}, {transform_indices = @transform_8, window_bounds = array<i64: 8, 16>}]} {
    %c0 = arith.constant 0 : index
    %c0_0 = arith.constant 0 : index
    %0 = vector.load %arg1[%c0, %c0_0] : memref<8x32xf32, #tpu.memory_space<vmem>>, vector<8x32xf32>
    %c0_1 = arith.constant 0 : index
    %c0_2 = arith.constant 0 : index
    %1 = vector.load %arg3[%c0_1, %c0_2] : memref<32x128xf32, #tpu.memory_space<vmem>>, vector<32x128xf32>
    %cst = arith.constant dense<0.000000e+00> : vector<8x128xf32>
    %2 = tpu.matmul %0, %1, %cst {dimension_numbers = #tpu.dot_dimension_numbers<[1], [0], [0], [1], [0, 0, 1, 1], [], []>} : vector<8x32xf32>, vector<32x128xf32>, vector<8x128xf32> -> vector<8x128xf32>
    %c0_3 = arith.constant 0 : index
    %c0_4 = arith.constant 0 : index
    %3 = vector.load %arg2[%c0_3, %c0_4] : memref<8x1xi32, #tpu.memory_space<vmem>>, vector<8x1xi32>
    %4 = tpu.iota {dimensions = array<i32: 1>} : vector<8x16xi32>
    %5 = vector.broadcast %3 : vector<8x1xi32> to vector<8x16xi32>
    %6 = arith.cmpi eq, %4, %5 : vector<8x16xi32>
    %7 = arith.extui %6 : vector<8x16xi1> to vector<8x16xi32>
    %8 = arith.sitofp %7 : vector<8x16xi32> to vector<8x16xf32>
    %c0_5 = arith.constant 0 : index
    %c0_6 = arith.constant 0 : index
    %9 = vector.load %arg4[%c0_5, %c0_6] : memref<16x128xf32, #tpu.memory_space<vmem>>, vector<16x128xf32>
    %cst_7 = arith.constant dense<0.000000e+00> : vector<8x128xf32>
    %10 = tpu.matmul %8, %9, %cst_7 {dimension_numbers = #tpu.dot_dimension_numbers<[1], [0], [0], [1], [0, 0, 1, 1], [], []>} : vector<8x16xf32>, vector<16x128xf32>, vector<8x128xf32> -> vector<8x128xf32>
    %11 = arith.addf %2, %10 : vector<8x128xf32>
    %c0_8 = arith.constant 0 : index
    %c0_9 = arith.constant 0 : index
    %12 = vector.load %arg5[%c0_8, %c0_9] : memref<1x128xf32, #tpu.memory_space<vmem>>, vector<1x128xf32>
    %13 = vector.broadcast %12 : vector<1x128xf32> to vector<8x128xf32>
    %14 = arith.addf %11, %13 : vector<8x128xf32>
    %cst_10 = arith.constant 0.000000e+00 : f32
    %15 = vector.broadcast %cst_10 : f32 to vector<8x128xf32>
    %16 = arith.maximumf %14, %15 : vector<8x128xf32>
    %c0_11 = arith.constant 0 : index
    %c0_12 = arith.constant 0 : index
    %17 = vector.load %arg6[%c0_11, %c0_12] : memref<128x256xf32, #tpu.memory_space<vmem>>, vector<128x256xf32>
    %cst_13 = arith.constant dense<0.000000e+00> : vector<8x256xf32>
    %18 = tpu.matmul %16, %17, %cst_13 {dimension_numbers = #tpu.dot_dimension_numbers<[1], [0], [0], [1], [0, 0, 1, 1], [], []>} : vector<8x128xf32>, vector<128x256xf32>, vector<8x256xf32> -> vector<8x256xf32>
    %c0_14 = arith.constant 0 : index
    %c0_15 = arith.constant 0 : index
    %19 = vector.load %arg7[%c0_14, %c0_15] : memref<1x256xf32, #tpu.memory_space<vmem>>, vector<1x256xf32>
    %20 = vector.broadcast %19 : vector<1x256xf32> to vector<8x256xf32>
    %21 = arith.addf %18, %20 : vector<8x256xf32>
    %22 = vector.extract_strided_slice %21 {offsets = [0, 0], sizes = [8, 16], strides = [1, 1]} : vector<8x256xf32> to vector<8x16xf32>
    %c0_16 = arith.constant 0 : index
    %c0_17 = arith.constant 0 : index
    %23 = vector.load %arg8[%c0_16, %c0_17] : memref<8x16xf32, #tpu.memory_space<vmem>>, vector<8x16xf32>
    tpu.vector_store %arg8[%c0_16, %c0_17], %22 {strides = array<i32>} : memref<8x16xf32, #tpu.memory_space<vmem>>, vector<8x16xf32>,
    %24 = vector.extract_strided_slice %21 {offsets = [0, 128], sizes = [8, 16], strides = [1, 1]} : vector<8x256xf32> to vector<8x16xf32>
    %c0_18 = arith.constant 0 : index
    %c0_19 = arith.constant 0 : index
    %25 = vector.load %arg9[%c0_18, %c0_19] : memref<8x16xf32, #tpu.memory_space<vmem>>, vector<8x16xf32>
    tpu.vector_store %arg9[%c0_18, %c0_19], %24 {strides = array<i32>} : memref<8x16xf32, #tpu.memory_space<vmem>>, vector<8x16xf32>,
    return
  }
  func.func @transform_0(%arg0: i32) -> (i32, i32) {
    %c0_i32 = arith.constant 0 : i32
    %c0_i32_0 = arith.constant 0 : i32
    return %arg0, %c0_i32 : i32, i32
  }
  func.func @transform_1(%arg0: i32) -> (i32, i32) {
    %c0_i32 = arith.constant 0 : i32
    %c0_i32_0 = arith.constant 0 : i32
    return %arg0, %c0_i32 : i32, i32
  }
  func.func @transform_2(%arg0: i32) -> (i32, i32) {
    %c0_i32 = arith.constant 0 : i32
    %c0_i32_0 = arith.constant 0 : i32
    %c0_i32_1 = arith.constant 0 : i32
    return %c0_i32, %c0_i32_0 : i32, i32
  }
  func.func @transform_3(%arg0: i32) -> (i32, i32) {
    %c0_i32 = arith.constant 0 : i32
    %c0_i32_0 = arith.constant 0 : i32
    %c0_i32_1 = arith.constant 0 : i32
    return %c0_i32, %c0_i32_0 : i32, i32
  }
  func.func @transform_4(%arg0: i32) -> (i32, i32) {
    %c0_i32 = arith.constant 0 : i32
    %c0_i32_0 = arith.constant 0 : i32
    %c0_i32_1 = arith.constant 0 : i32
    return %c0_i32, %c0_i32_0 : i32, i32
  }
  func.func @transform_5(%arg0: i32) -> (i32, i32) {
    %c0_i32 = arith.constant 0 : i32
    %c0_i32_0 = arith.constant 0 : i32
    %c0_i32_1 = arith.constant 0 : i32
    return %c0_i32, %c0_i32_0 : i32, i32
  }
  func.func @transform_6(%arg0: i32) -> (i32, i32) {
    %c0_i32 = arith.constant 0 : i32
    %c0_i32_0 = arith.constant 0 : i32
    %c0_i32_1 = arith.constant 0 : i32
    return %c0_i32, %c0_i32_0 : i32, i32
  }
  func.func @transform_7(%arg0: i32) -> (i32, i32) {
    %c0_i32 = arith.constant 0 : i32
    %c0_i32_0 = arith.constant 0 : i32
    return %arg0, %c0_i32 : i32, i32
  }
  func.func @transform_8(%arg0: i32) -> (i32, i32) {
    %c0_i32 = arith.constant 0 : i32
    %c0_i32_0 = arith.constant 0 : i32
    return %arg0, %c0_i32 : i32, i32
  }
}

</mosaic_0001>

<llo_original>
// kernel: tpu_custom_call.1
$region0: #{tpu_custom_call.1}
  #allocation0 [shape = 'u32[]', space=smem, size = 0x4, offset = 0x4, fixed_abs, tag = 'smem constant byte address 0x4 - core index']
  #allocation1 [shape = 'u32[144,128]{1,0:T(1,128)}', space=vmem, size = 0x12000, scoped, tag = 'internal scratch']
  %s0 = inlined_call_operand.hbm [shape: f32[8,32], index: 0, kind: input, shape index: {}]
  %s1 = inlined_call_operand.vmem [shape: s32[8,1], index: 1, kind: input, shape index: {}]
  %s2 = inlined_call_operand.hbm [shape: f32[32,128], index: 2, kind: input, shape index: {}]
  %s3 = inlined_call_operand.vmem [shape: f32[16,128], index: 3, kind: input, shape index: {}]
  %s4 = inlined_call_operand.vmem [shape: f32[1,128], index: 4, kind: input, shape index: {}]
  %s5 = inlined_call_operand.hbm [shape: f32[128,256], index: 5, kind: input, shape index: {}]
  %s6 = inlined_call_operand.vmem [shape: f32[1,256], index: 6, kind: input, shape index: {}]
  %s7 = inlined_call_operand.hbm [shape: f32[8,16], index: 7, kind: output, shape index: {0}]
  %s8 = inlined_call_operand.hbm [shape: f32[8,16], index: 8, kind: output, shape index: {1}]
  %9 = xla_tuple %s7, %s8
  %s10 = sld [smem:[#allocation0]]
  $region58: #{tpu_custom_call.1} parent=0
    _
  %s12 = ssub.s32 1, %s10
  %s13 = scalar_select 0, %s12, %s10
  $region1: #{tpu_custom_call.1} parent=0
    #allocation2 [shape = 'u8[4096]{0}', space=vmem, size = 0x1000, scoped, tag = 'input window, operand 0, single buffered']
    #allocation3 [shape = 's32[1]{0}', space=sflag, size = 0x4, scoped, tag = 'scoped memory for tpu_custom_call.1']
    #allocation4 [shape = 's32[1]{0}', space=sflag, size = 0x4, scoped, tag = 'scoped memory for tpu_custom_call.1']
    #allocation5 [shape = 'u8[16384]{0}', space=vmem, size = 0x4000, scoped, tag = 'input window, operand 2, single buffered']
    #allocation6 [shape = 's32[1]{0}', space=sflag, size = 0x4, scoped, tag = 'scoped memory for tpu_custom_call.1']
    #allocation7 [shape = 'u8[131072]{0}', space=vmem, size = 0x20000, scoped, tag = 'input window, operand 5, single buffered']
    #allocation8 [shape = 'u8[4096]{0}', space=vmem, size = 0x1000, scoped, tag = 'output window, operand 0, single buffered']
    #allocation9 [shape = 'u8[4096]{0}', space=vmem, size = 0x1000, scoped, tag = 'output window, operand 1, single buffered']
    #allocation10 [shape = 's32[1]{0}', space=sflag, size = 0x4, scoped, tag = 'scoped memory for tpu_custom_call.1']
    %14 = vsyncpa [#allocation3], 0
    %15 = vsyncpa [#allocation6], 0
    %16 = vsyncpa [#allocation4], 0
    %17 = vsyncpa [#allocation10], 0
    // Predicated region
    $region2: #{tpu_custom_call.1} parent=1 // pred_check
      _
    $region3: #{tpu_custom_call.1} parent=1 // pred_check_branch
      %19 = sbr.rel (0) target = $region5
    $region4: #{tpu_custom_call.1} parent=1 // pred_region
      %s21 = ssub.s32 128, 128
      %22 = vsyncadd [#allocation3], %s21
      %s24 = sshll.u32 [#allocation2], 4
      %s25 = int_to_ptr.vmem [resolvable:$true] %s24
      %27 = dma.hbm_to_vmem [thread:$0]  %s0, 128, %s25, [#allocation3]
    $region5: #{tpu_custom_call.1} parent=1 // pred_fallthru
      _
    // Predicated region
    $region6: #{tpu_custom_call.1} parent=1 // pred_check
      _
    $region7: #{tpu_custom_call.1} parent=1 // pred_check_branch
      %29 = sbr.rel (0) target = $region9
    $region8: #{tpu_custom_call.1} parent=1 // pred_region
      _
    $region9: #{tpu_custom_call.1} parent=1 // pred_fallthru
      _
    // Predicated region
    $region10: #{tpu_custom_call.1} parent=1 // pred_check
      _
    $region11: #{tpu_custom_call.1} parent=1 // pred_check_branch
      %31 = sbr.rel (0) target = $region13
    $region12: #{tpu_custom_call.1} parent=1 // pred_region
      %s33 = ssub.s32 512, 512
      %34 = vsyncadd [#allocation6], %s33
      %s35 = sshll.u32 [#allocation5], 4
      %s36 = int_to_ptr.vmem [resolvable:$true] %s35
      %41 = dma.hbm_to_vmem [thread:$0]  %s2, 512, %s36, [#allocation6], 128, 128, 8
    $region13: #{tpu_custom_call.1} parent=1 // pred_fallthru
      _
    // Predicated region
    $region14: #{tpu_custom_call.1} parent=1 // pred_check
      _
    $region15: #{tpu_custom_call.1} parent=1 // pred_check_branch
      %43 = sbr.rel (0) target = $region17
    $region16: #{tpu_custom_call.1} parent=1 // pred_region
      _
    $region17: #{tpu_custom_call.1} parent=1 // pred_fallthru
      _
    // Predicated region
    $region18: #{tpu_custom_call.1} parent=1 // pred_check
      _
    $region19: #{tpu_custom_call.1} parent=1 // pred_check_branch
      %45 = sbr.rel (0) target = $region21
    $region20: #{tpu_custom_call.1} parent=1 // pred_region
      _
    $region21: #{tpu_custom_call.1} parent=1 // pred_fallthru
      _
    // Predicated region
    $region22: #{tpu_custom_call.1} parent=1 // pred_check
      _
    $region23: #{tpu_custom_call.1} parent=1 // pred_check_branch
      %47 = sbr.rel (0) target = $region25
    $region24: #{tpu_custom_call.1} parent=1 // pred_region
      %s49 = ssub.s32 4096, 4096
      %50 = vsyncadd [#allocation6], %s49
      %s51 = sshll.u32 [#allocation7], 4
      %s52 = int_to_ptr.vmem [resolvable:$true] %s51
      %57 = dma.hbm_to_vmem [thread:$0]  %s5, 4096, %s52, [#allocation6], 256, 256, 16
    $region25: #{tpu_custom_call.1} parent=1 // pred_fallthru
      _
    // Predicated region
    $region26: #{tpu_custom_call.1} parent=1 // pred_check
      _
    $region27: #{tpu_custom_call.1} parent=1 // pred_check_branch
      %59 = sbr.rel (0) target = $region29
    $region28: #{tpu_custom_call.1} parent=1 // pred_region
      _
    $region29: #{tpu_custom_call.1} parent=1 // pred_fallthru
      _
    // Predicated region
    $region30: #{tpu_custom_call.1} parent=1 // pred_check
      _
    $region31: #{tpu_custom_call.1} parent=1 // pred_check_branch
      %61 = sbr.rel (0) target = $region33
    $region32: #{tpu_custom_call.1} parent=1 // pred_region
      %62 = dma.done [#allocation3], 128
    $region33: #{tpu_custom_call.1} parent=1 // pred_fallthru
      _
    // Predicated region
    $region34: #{tpu_custom_call.1} parent=1 // pred_check
      _
    $region35: #{tpu_custom_call.1} parent=1 // pred_check_branch
      %64 = sbr.rel (0) target = $region37
    $region36: #{tpu_custom_call.1} parent=1 // pred_region
      %65 = dma.done [#allocation6], 512
    $region37: #{tpu_custom_call.1} parent=1 // pred_fallthru
      _
    // Predicated region
    $region38: #{tpu_custom_call.1} parent=1 // pred_check
      _
    $region39: #{tpu_custom_call.1} parent=1 // pred_check_branch
      %67 = sbr.rel (0) target = $region41
    $region40: #{tpu_custom_call.1} parent=1 // pred_region
      %68 = dma.done [#allocation6], 4096
    $region41: #{tpu_custom_call.1} parent=1 // pred_fallthru
      _
    %v69 = vld [vmem:[#allocation2] sm:$0xff]
    %v70 = vld [vmem:[#allocation5] sm:$0xff]
    %v71 = vld [vmem:[#allocation5 + $0x8] sm:$0xff]
    %v72 = vld [vmem:[#allocation5 + $0x10] sm:$0xff]
    %v73 = vld [vmem:[#allocation5 + $0x18] sm:$0xff]
    %v74 = vld [vmem:[%s1] sm:$0xff]
    %v75 = vlaneseq
    %v76 = vand.u32 %v75, 127
    %77 = vset.pattern.permute.xlu0 0
    %78 = vperm.xlu0 %77, %v74
    %v79 = vpop.permute.xlu0 %78
    %vm80 = vcmp.eq.s32.totalorder %v76, %v79
    %v81 = vsel %vm80, 1, 0
    %v82 = vcvt.s32.f32 %v81
    %v83 = vld [vmem:[%s3] sm:$0xff]
    %v84 = vld [vmem:[%s3 + $0x8] sm:$0xff]
    %vm85 = vcmask 130048
    %v87 = vsel %vm85, %v82, 0
    %89 = vmatprep.subr.mxu0 0.0
    %90 = vmatpush1.msra.mxu0 %v83
    %91 = vmatprep.subr.mxu0 0.0
    %92 = vmatpush1.msra.mxu0 %v84
    %93 = vmatprep.subr.mxu0 0.0
    %94 = vmatpush1.msra.mxu0 0.0
    %95 = vmatprep.subr.mxu0 0.0
    %96 = vmatpush1.msra.mxu0 0.0
    %97 = vmatprep.subr.mxu0 0.0
    %98 = vmatpush1.msra.mxu0 0.0
    %99 = vmatprep.subr.mxu0 0.0
    %100 = vmatpush1.msra.mxu0 0.0
    %101 = vmatprep.subr.mxu0 0.0
    %102 = vmatpush1.msra.mxu0 0.0
    %103 = vmatprep.subr.mxu0 0.0
    %104 = vmatpush1.msra.mxu0 0.0
    %105 = vmatprep.subr.mxu0 0.0
    %106 = vmatpush1.msra.mxu0 0.0
    %107 = vmatprep.subr.mxu0 0.0
    %108 = vmatpush1.msra.mxu0 0.0
    %109 = vmatprep.subr.mxu0 0.0
    %110 = vmatpush1.msra.mxu0 0.0
    %111 = vmatprep.subr.mxu0 0.0
    %112 = vmatpush1.msra.mxu0 0.0
    %113 = vmatprep.subr.mxu0 0.0
    %114 = vmatpush1.msra.mxu0 0.0
    %115 = vmatprep.subr.mxu0 0.0
    %116 = vmatpush1.msra.mxu0 0.0
    %117 = vmatprep.subr.mxu0 0.0
    %118 = vmatpush1.msra.mxu0 0.0
    %119 = vmatprep.subr.mxu0 0.0
    %120 = vmatpush1.msra.mxu0 0.0
    %121 = vmatprep.subr.mxu0 0.0
    %122 = vmatpush1.msra.mxu0 0.0
    %123 = vmatprep.subr.mxu0 0.0
    %124 = vmatpush1.msra.mxu0 0.0
    %125 = vmatprep.subr.mxu0 0.0
    %126 = vmatpush1.msra.mxu0 0.0
    %127 = vmatprep.subr.mxu0 0.0
    %128 = vmatpush1.msra.mxu0 0.0
    %129 = vmatprep.subr.mxu0 0.0
    %130 = vmatpush1.msra.mxu0 0.0
    %131 = vmatprep.subr.mxu0 0.0
    %132 = vmatpush1.msra.mxu0 0.0
    %133 = vmatprep.subr.mxu0 0.0
    %134 = vmatpush1.msra.mxu0 0.0
    %135 = vmatprep.subr.mxu0 0.0
    %136 = vmatpush1.msra.mxu0 0.0
    %137 = vmatprep.subr.mxu0 0.0
    %138 = vmatpush1.msra.mxu0 0.0
    %139 = vmatprep.subr.mxu0 0.0
    %140 = vmatpush1.msra.mxu0 0.0
    %141 = vmatprep.subr.mxu0 0.0
    %142 = vmatpush1.msra.mxu0 0.0
    %143 = vmatprep.subr.mxu0 0.0
    %144 = vmatpush1.msra.mxu0 0.0
    %145 = vmatprep.subr.mxu0 0.0
    %146 = vmatpush1.msra.mxu0 0.0
    %147 = vmatprep.subr.mxu0 0.0
    %148 = vmatpush1.msra.mxu0 0.0
    %149 = vmatprep.subr.mxu0 0.0
    %150 = vmatpush1.msra.mxu0 0.0
    %151 = vmatprep.subr.mxu0 0.0
    %152 = vmatpush1.msra.mxu0 0.0
    %153 = vmatprep.mubr.f32.mxu0 0.0
    %154 = vmatmul.mubr.f32.gmra.mrb[0].mxu0 %v87
    %v155 = vpop.f32.mrb[0].mxu0
    %v156 = vadd.f32 0.0, %v155
    %v157 = vpop.f32.mrb[0].mxu0
    %158 = vdwg.mxu0
    %vm159 = vcmask 261120
    %v161 = vsel %vm159, %v69, 0
    %163 = vmatprep.subr.mxu0 0.0
    %164 = vmatpush1.msra.mxu0 %v70
    %165 = vmatprep.subr.mxu0 0.0
    %166 = vmatpush1.msra.mxu0 %v71
    %167 = vmatprep.subr.mxu0 0.0
    %168 = vmatpush1.msra.mxu0 %v72
    %169 = vmatprep.subr.mxu0 0.0
    %170 = vmatpush1.msra.mxu0 %v73
    %171 = vmatprep.subr.mxu0 0.0
    %172 = vmatpush1.msra.mxu0 0.0
    %173 = vmatprep.subr.mxu0 0.0
    %174 = vmatpush1.msra.mxu0 0.0
    %175 = vmatprep.subr.mxu0 0.0
    %176 = vmatpush1.msra.mxu0 0.0
    %177 = vmatprep.subr.mxu0 0.0
    %178 = vmatpush1.msra.mxu0 0.0
    %179 = vmatprep.subr.mxu0 0.0
    %180 = vmatpush1.msra.mxu0 0.0
    %181 = vmatprep.subr.mxu0 0.0
    %182 = vmatpush1.msra.mxu0 0.0
    %183 = vmatprep.subr.mxu0 0.0
    %184 = vmatpush1.msra.mxu0 0.0
    %185 = vmatprep.subr.mxu0 0.0
    %186 = vmatpush1.msra.mxu0 0.0
    %187 = vmatprep.subr.mxu0 0.0
    %188 = vmatpush1.msra.mxu0 0.0
    %189 = vmatprep.subr.mxu0 0.0
    %190 = vmatpush1.msra.mxu0 0.0
    %191 = vmatprep.subr.mxu0 0.0
    %192 = vmatpush1.msra.mxu0 0.0
    %193 = vmatprep.subr.mxu0 0.0
    %194 = vmatpush1.msra.mxu0 0.0
    %195 = vmatprep.subr.mxu0 0.0
    %196 = vmatpush1.msra.mxu0 0.0
    %197 = vmatprep.subr.mxu0 0.0
    %198 = vmatpush1.msra.mxu0 0.0
    %199 = vmatprep.subr.mxu0 0.0
    %200 = vmatpush1.msra.mxu0 0.0
    %201 = vmatprep.subr.mxu0 0.0
    %202 = vmatpush1.msra.mxu0 0.0
    %203 = vmatprep.subr.mxu0 0.0
    %204 = vmatpush1.msra.mxu0 0.0
    %205 = vmatprep.subr.mxu0 0.0
    %206 = vmatpush1.msra.mxu0 0.0
    %207 = vmatprep.subr.mxu0 0.0
    %208 = vmatpush1.msra.mxu0 0.0
    %209 = vmatprep.subr.mxu0 0.0
    %210 = vmatpush1.msra.mxu0 0.0
    %211 = vmatprep.subr.mxu0 0.0
    %212 = vmatpush1.msra.mxu0 0.0
    %213 = vmatprep.subr.mxu0 0.0
    %214 = vmatpush1.msra.mxu0 0.0
    %215 = vmatprep.subr.mxu0 0.0
    %216 = vmatpush1.msra.mxu0 0.0
    %217 = vmatprep.subr.mxu0 0.0
    %218 = vmatpush1.msra.mxu0 0.0
    %219 = vmatprep.subr.mxu0 0.0
    %220 = vmatpush1.msra.mxu0 0.0
    %221 = vmatprep.subr.mxu0 0.0
    %222 = vmatpush1.msra.mxu0 0.0
    %223 = vmatprep.subr.mxu0 0.0
    %224 = vmatpush1.msra.mxu0 0.0
    %225 = vmatprep.subr.mxu0 0.0
    %226 = vmatpush1.msra.mxu0 0.0
    %227 = vmatprep.mubr.f32.mxu0 0.0
    %228 = vmatmul.mubr.f32.gmra.mrb[0].mxu0 %v161
    %v229 = vpop.f32.mrb[0].mxu0
    %v230 = vadd.f32 %v156, %v229
    %v231 = vpop.f32.mrb[0].mxu0
    %232 = vdwg.mxu0
    %v233 = vld [vmem:[%s4] sm:$0x1]
    %v235 = vlaneseq
    %v236 = vshrl.u32 %v235, 7
    %v237 = vsub.s32 0, %v236
    %v238 = vrot.slane %v233, %v237
    %v240 = vadd.f32 %v230, %v238
    %v241 = vmax.f32 %v240, 0.0
    %v242 = vld [vmem:[#allocation7] sm:$0xff]
    %v243 = vld [vmem:[#allocation7 + $0x8] sm:$0xff]
    %v244 = vld [vmem:[#allocation7 + $0x10] sm:$0xff]
    %v245 = vld [vmem:[#allocation7 + $0x18] sm:$0xff]
    %v246 = vld [vmem:[#allocation7 + $0x20] sm:$0xff]
    %v247 = vld [vmem:[#allocation7 + $0x28] sm:$0xff]
    %v248 = vld [vmem:[#allocation7 + $0x30] sm:$0xff]
    %v249 = vld [vmem:[#allocation7 + $0x38] sm:$0xff]
    %v250 = vld [vmem:[#allocation7 + $0x40] sm:$0xff]
    %v251 = vld [vmem:[#allocation7 + $0x48] sm:$0xff]
    %v252 = vld [vmem:[#allocation7 + $0x50] sm:$0xff]
    %v253 = vld [vmem:[#allocation7 + $0x58] sm:$0xff]
    %v254 = vld [vmem:[#allocation7 + $0x60] sm:$0xff]
    %v255 = vld [vmem:[#allocation7 + $0x68] sm:$0xff]
    %v256 = vld [vmem:[#allocation7 + $0x70] sm:$0xff]
    %v257 = vld [vmem:[#allocation7 + $0x78] sm:$0xff]
    %v258 = vld [vmem:[#allocation7 + $0x80] sm:$0xff]
    %v259 = vld [vmem:[#allocation7 + $0x88] sm:$0xff]
    %v260 = vld [vmem:[#allocation7 + $0x90] sm:$0xff]
    %v261 = vld [vmem:[#allocation7 + $0x98] sm:$0xff]
    %v262 = vld [vmem:[#allocation7 + $0xa0] sm:$0xff]
    %v263 = vld [vmem:[#allocation7 + $0xa8] sm:$0xff]
    %v264 = vld [vmem:[#allocation7 + $0xb0] sm:$0xff]
    %v265 = vld [vmem:[#allocation7 + $0xb8] sm:$0xff]
    %v266 = vld [vmem:[#allocation7 + $0xc0] sm:$0xff]
    %v267 = vld [vmem:[#allocation7 + $0xc8] sm:$0xff]
    %v268 = vld [vmem:[#allocation7 + $0xd0] sm:$0xff]
    %v269 = vld [vmem:[#allocation7 + $0xd8] sm:$0xff]
    %v270 = vld [vmem:[#allocation7 + $0xe0] sm:$0xff]
    %v271 = vld [vmem:[#allocation7 + $0xe8] sm:$0xff]
    %v272 = vld [vmem:[#allocation7 + $0xf0] sm:$0xff]
    %v273 = vld [vmem:[#allocation7 + $0xf8] sm:$0xff]
    %v274 = vld [vmem:[%s6] sm:$0x3]
    %v276 = vlaneseq
    %v277 = vshrl.u32 %v276, 7
    %v278 = vsub.s32 0, %v277
    %v279 = vrot.slane %v274, %v278
    %v280 = vlaneseq
    %v281 = vshrl.u32 %v280, 7
    %v282 = vsub.s32 1, %v281
    %v283 = vrot.slane %v274, %v282
    %286 = vmatprep.subr.mxu0 %v243
    %287 = vmatpush1.msra.mxu0 %v242
    %288 = vmatprep.subr.mxu0 %v245
    %289 = vmatpush1.msra.mxu0 %v244
    %290 = vmatprep.subr.mxu0 %v247
    %291 = vmatpush1.msra.mxu0 %v246
    %292 = vmatprep.subr.mxu0 %v249
    %293 = vmatpush1.msra.mxu0 %v248
    %294 = vmatprep.subr.mxu0 %v251
    %295 = vmatpush1.msra.mxu0 %v250
    %296 = vmatprep.subr.mxu0 %v253
    %297 = vmatpush1.msra.mxu0 %v252
    %298 = vmatprep.subr.mxu0 %v255
    %299 = vmatpush1.msra.mxu0 %v254
    %300 = vmatprep.subr.mxu0 %v257
    %301 = vmatpush1.msra.mxu0 %v256
    %302 = vmatprep.subr.mxu0 %v259
    %303 = vmatpush1.msra.mxu0 %v258
    %304 = vmatprep.subr.mxu0 %v261
    %305 = vmatpush1.msra.mxu0 %v260
    %306 = vmatprep.subr.mxu0 %v263
    %307 = vmatpush1.msra.mxu0 %v262
    %308 = vmatprep.subr.mxu0 %v265
    %309 = vmatpush1.msra.mxu0 %v264
    %310 = vmatprep.subr.mxu0 %v267
    %311 = vmatpush1.msra.mxu0 %v266
    %312 = vmatprep.subr.mxu0 %v269
    %313 = vmatpush1.msra.mxu0 %v268
    %314 = vmatprep.subr.mxu0 %v271
    %315 = vmatpush1.msra.mxu0 %v270
    %316 = vmatprep.subr.mxu0 %v273
    %317 = vmatpush1.msra.mxu0 %v272
    %318 = vmatprep.subr.mxu0 0.0
    %319 = vmatpush1.msra.mxu0 0.0
    %320 = vmatprep.subr.mxu0 0.0
    %321 = vmatpush1.msra.mxu0 0.0
    %322 = vmatprep.subr.mxu0 0.0
    %323 = vmatpush1.msra.mxu0 0.0
    %324 = vmatprep.subr.mxu0 0.0
    %325 = vmatpush1.msra.mxu0 0.0
    %326 = vmatprep.subr.mxu0 0.0
    %327 = vmatpush1.msra.mxu0 0.0
    %328 = vmatprep.subr.mxu0 0.0
    %329 = vmatpush1.msra.mxu0 0.0
    %330 = vmatprep.subr.mxu0 0.0
    %331 = vmatpush1.msra.mxu0 0.0
    %332 = vmatprep.subr.mxu0 0.0
    %333 = vmatpush1.msra.mxu0 0.0
    %334 = vmatprep.subr.mxu0 0.0
    %335 = vmatpush1.msra.mxu0 0.0
    %336 = vmatprep.subr.mxu0 0.0
    %337 = vmatpush1.msra.mxu0 0.0
    %338 = vmatprep.subr.mxu0 0.0
    %339 = vmatpush1.msra.mxu0 0.0
    %340 = vmatprep.subr.mxu0 0.0
    %341 = vmatpush1.msra.mxu0 0.0
    %342 = vmatprep.subr.mxu0 0.0
    %343 = vmatpush1.msra.mxu0 0.0
    %344 = vmatprep.subr.mxu0 0.0
    %345 = vmatpush1.msra.mxu0 0.0
    %346 = vmatprep.subr.mxu0 0.0
    %347 = vmatpush1.msra.mxu0 0.0
    %348 = vmatprep.subr.mxu0 0.0
    %349 = vmatpush1.msra.mxu0 0.0
    %350 = vmatprep.mubr.f32.mxu0 0.0
    %351 = vmatmul.mubr.f32.gmra.mrb[0].mxu0 %v241
    %v352 = vpop.f32.mrb[0].mxu0
    %v353 = vadd.f32 %v279, %v352
    %v354 = vpop.f32.mrb[0].mxu0
    %v355 = vadd.f32 %v283, %v354
    %356 = vdwg.mxu0
    %357 = vst.msk [vmem:[#allocation8] sm:$0xff] %vm85, %v353
    %358 = vst.msk [vmem:[#allocation9] sm:$0xff] %vm85, %v355
    // Predicated region
    $region42: #{tpu_custom_call.1} parent=1 // pred_check
      _
    $region43: #{tpu_custom_call.1} parent=1 // pred_check_branch
      %360 = sbr.rel (0) target = $region45
    $region44: #{tpu_custom_call.1} parent=1 // pred_region
      %s362 = ssub.s32 128, 128
      %363 = vsyncadd [#allocation4], %s362
      %s365 = sshll.u32 [#allocation8], 4
      %s366 = int_to_ptr.vmem [resolvable:$true] %s365
      %368 = dma.vmem_to_hbm [thread:$0]  %s366, 128, %s7, [#allocation4]
    $region45: #{tpu_custom_call.1} parent=1 // pred_fallthru
      _
    // Predicated region
    $region46: #{tpu_custom_call.1} parent=1 // pred_check
      _
    $region47: #{tpu_custom_call.1} parent=1 // pred_check_branch
      %370 = sbr.rel (0) target = $region49
    $region48: #{tpu_custom_call.1} parent=1 // pred_region
      %s372 = ssub.s32 128, 128
      %373 = vsyncadd [#allocation10], %s372
      %s375 = sshll.u32 [#allocation9], 4
      %s376 = int_to_ptr.vmem [resolvable:$true] %s375
      %378 = dma.vmem_to_hbm [thread:$0]  %s376, 128, %s8, [#allocation10]
    $region49: #{tpu_custom_call.1} parent=1 // pred_fallthru
      _
    // Predicated region
    $region50: #{tpu_custom_call.1} parent=1 // pred_check
      _
    $region51: #{tpu_custom_call.1} parent=1 // pred_check_branch
      %380 = sbr.rel (0) target = $region53
    $region52: #{tpu_custom_call.1} parent=1 // pred_region
      %381 = dma.done [#allocation4], 128
    $region53: #{tpu_custom_call.1} parent=1 // pred_fallthru
      _
    // Predicated region
    $region54: #{tpu_custom_call.1} parent=1 // pred_check
      _
    $region55: #{tpu_custom_call.1} parent=1 // pred_check_branch
      %383 = sbr.rel (0) target = $region57
    $region56: #{tpu_custom_call.1} parent=1 // pred_region
      %384 = dma.done [#allocation10], 128
    $region57: #{tpu_custom_call.1} parent=1 // pred_fallthru
      _
    %385 = vsyncpa [#allocation3], 1
    %386 = vsyncpa [#allocation6], 1
    %387 = vsyncpa [#allocation4], 1
    %388 = vsyncpa [#allocation10], 1

</llo_original>
